<compile_context>
chip_gen: v7x
topology: tpu7x:2x2x1
jax: 0.10.0
libtpu: 0.0.40
codegen_flags: <defaults>
</compile_context>

<pallas_src>
import jax
import jax.numpy as jnp
from jax.experimental import pallas as pl
from jax.experimental.pallas import tpu as pltpu

H1 = 256     # first hidden width
H2 = 128     # second hidden width
LANE = 128


def _round_up(x, m):
    return ((x + m - 1) // m) * m


def _mlp_kernel(x_ref, w1_ref, b1_ref, w2_ref, b2_ref, w3_ref, b3_ref,
                o_ref, acc_ref):
    k = pl.program_id(1)

    @pl.when(k == 0)
    def _():
        acc_ref[...] = jnp.zeros_like(acc_ref)

    # Layer 1 partial product for this K tile (bf16 MXU, f32 accumulate).
    acc_ref[...] += jnp.dot(x_ref[...], w1_ref[...],
                            preferred_element_type=jnp.float32)

    @pl.when(k == pl.num_programs(1) - 1)
    def _():
        # Layer 1 epilogue: bias + ReLU   (Dropout -> identity, eval mode)
        h1 = jnp.maximum(acc_ref[...] + b1_ref[...], 0.0)
        # Layer 2: Linear(256, 128) + ReLU (Dropout -> identity, eval mode)
        h2 = jnp.dot(h1.astype(w2_ref.dtype), w2_ref[...],
                     preferred_element_type=jnp.float32)
        h2 = jnp.maximum(h2 + b2_ref[...], 0.0)
        # Layer 3: Linear(128, num_domains)  (N padded to lane-dense 128)
        out = jnp.dot(h2.astype(w3_ref.dtype), w3_ref[...],
                      preferred_element_type=jnp.float32)
        o_ref[...] = (out + b3_ref[...]).astype(o_ref.dtype)


def domain_classifier_forward(x, params):
    """Eval-mode forward.  x: (B, ...) is flattened to (B, input_dim) like x.view(B, -1)."""
    w1, b1, w2, b2, w3, b3 = params
    B = x.shape[0]
    x2d = x.reshape(B, -1)
    input_dim = x2d.shape[1]
    num_domains = w3.shape[1]
    out_dtype = x2d.dtype

    # ---- Tiling ----------------------------------------------------------
    TB = 256 if B >= 256 else _round_up(B, 8)        # batch tile (sublane aligned)
    Bp = _round_up(B, TB)
    TK = min(512, _round_up(input_dim, LANE))        # layer-1 reduction tile
    Kp = _round_up(input_dim, TK)
    Np = _round_up(max(num_domains, LANE), LANE)     # lane-dense padded logits
    grid = (Bp // TB, Kp // TK)

    # ---- Pad + cast operands (bf16 weights/activations, f32 biases) -------
    xb = jnp.pad(x2d.astype(jnp.bfloat16), ((0, Bp - B), (0, Kp - input_dim)))
    w1b = jnp.pad(w1.astype(jnp.bfloat16), ((0, Kp - input_dim), (0, 0)))
    w2b = w2.astype(jnp.bfloat16)
    w3b = jnp.pad(w3.astype(jnp.bfloat16), ((0, 0), (0, Np - num_domains)))
    b1f = b1.astype(jnp.float32)
    b2f = b2.astype(jnp.float32)
    b3f = jnp.pad(b3.astype(jnp.float32), ((0, 0), (0, Np - num_domains)))

    # ---- VMEM budget derived from actual block sizes (+ headroom) ---------
    out_bytes = jnp.dtype(out_dtype).itemsize
    vmem_needed = (
        2 * TB * TK * 2          # x tile, double-buffered, bf16
        + 2 * TK * H1 * 2        # w1 tile, double-buffered, bf16
        + H1 * H2 * 2            # w2 resident
        + H2 * Np * 2            # w3 resident
        + (H1 + H2 + Np) * 4     # biases (f32)
        + 2 * TB * Np * out_bytes  # output tile, double-buffered
        + TB * H1 * 4            # f32 accumulator scratch
    )
    vmem_limit = min(max(2 * vmem_needed + (4 << 20), 16 << 20), 40 << 20)

    cost = pl.CostEstimate(
        flops=2 * Bp * (Kp * H1 + H1 * H2 + H2 * Np),
        transcendentals=0,
        bytes_accessed=(xb.size + w1b.size + w2b.size + w3b.size) * 2
                       + (b1f.size + b2f.size + b3f.size) * 4
                       + Bp * Np * out_bytes,
    )

    out_padded = pl.pallas_call(
        _mlp_kernel,
        out_shape=jax.ShapeDtypeStruct((Bp, Np), out_dtype),
        grid_spec=pltpu.PrefetchScalarGridSpec(
            num_scalar_prefetch=0,
            grid=grid,
            in_specs=[
                pl.BlockSpec((TB, TK), lambda i, k: (i, k)),   # x tile
                pl.BlockSpec((TK, H1), lambda i, k: (k, 0)),   # w1 tile
                pl.BlockSpec((1, H1), lambda i, k: (0, 0)),    # b1 (resident)
                pl.BlockSpec((H1, H2), lambda i, k: (0, 0)),   # w2 (resident)
                pl.BlockSpec((1, H2), lambda i, k: (0, 0)),    # b2 (resident)
                pl.BlockSpec((H2, Np), lambda i, k: (0, 0)),   # w3 (resident)
                pl.BlockSpec((1, Np), lambda i, k: (0, 0)),    # b3 (resident)
            ],
            out_specs=pl.BlockSpec((TB, Np), lambda i, k: (i, 0)),
            scratch_shapes=[pltpu.VMEM((TB, H1), jnp.float32)],
        ),
        compiler_params=pltpu.CompilerParams(
            dimension_semantics=("parallel", "arbitrary"),
            vmem_limit_bytes=int(vmem_limit),
        ),
        cost_estimate=cost,
    )(xb, w1b, b1f, w2b, b2f, w3b, b3f)

    return out_padded[:B, :num_domains]


def init_params(key, input_dim, num_domains):
    """Deterministic init mimicking nn.Linear default (uniform +-1/sqrt(fan_in)).
    Weights kept as (in_features, out_features)."""
    dims = [(input_dim, H1), (H1, H2), (H2, num_domains)]
    params = []
    for (fan_in, fan_out) in dims:
        key, kw, kb = jax.random.split(key, 3)
        bound = 1.0 / (fan_in ** 0.5)
        w = jax.random.uniform(kw, (fan_in, fan_out), jnp.float32, -bound, bound)
        b = jax.random.uniform(kb, (1, fan_out), jnp.float32, -bound, bound)
        params += [w, b]
    return tuple(params)


if __name__ == "__main__":
    key = jax.random.PRNGKey(0)
    B, C, H, W = 2, 4, 16, 16          # input_dim = C*H*W = 1024
    num_domains = 4
    input_dim = C * H * W

    kx, kp = jax.random.split(key)
    x = jax.random.normal(kx, (B, C, H, W), jnp.float32)
    params = init_params(kp, input_dim, num_domains)

    out = domain_classifier_forward(x, params)
    jax.block_until_ready(out)

    # Reference in plain JAX with the same bf16 weights / f32 accumulation
    # (eval-mode dropout = identity).
    w1, b1, w2, b2, w3, b3 = params
    xf = x.reshape(B, -1).astype(jnp.bfloat16)
    h = jnp.dot(xf, w1.astype(jnp.bfloat16), preferred_element_type=jnp.float32)
    h = jnp.maximum(h + b1, 0.0)
    h = jnp.dot(h.astype(jnp.bfloat16), w2.astype(jnp.bfloat16),
                preferred_element_type=jnp.float32)
    h = jnp.maximum(h + b2, 0.0)
    ref = jnp.dot(h.astype(jnp.bfloat16), w3.astype(jnp.bfloat16),
                  preferred_element_type=jnp.float32) + b3

    assert out.shape == (B, num_domains)
    assert jnp.allclose(out, ref.astype(out.dtype), atol=2e-2, rtol=2e-2)

    print("KERNEL_OK")
</pallas_src>

<mosaic_0001>
module attributes {stable_mosaic.version = 11 : i64} {
  func.func @_mlp_kernel(%arg0: i32, %arg1: i32, %arg2: memref<8x512xbf16, #tpu.memory_space<vmem>>, %arg3: memref<512x256xbf16, #tpu.memory_space<vmem>>, %arg4: memref<1x256xf32, #tpu.memory_space<vmem>>, %arg5: memref<256x128xbf16, #tpu.memory_space<vmem>>, %arg6: memref<1x128xf32, #tpu.memory_space<vmem>>, %arg7: memref<128x128xbf16, #tpu.memory_space<vmem>>, %arg8: memref<1x128xf32, #tpu.memory_space<vmem>>, %arg9: memref<8x128xf32, #tpu.memory_space<vmem>>, %arg10: memref<8x256xf32, #tpu.memory_space<vmem>>) attributes {dimension_semantics = [#tpu.dimension_semantics<parallel>, #tpu.dimension_semantics<arbitrary>], iteration_bounds = array<i64: 1, 2>, scalar_prefetch = 0 : i64, scratch_operands = 1 : i64, tpu.core_type = #tpu.core_type<tc>, window_params = [{transform_indices = @transform_0, window_bounds = array<i64: 8, 512>}, {transform_indices = @transform_1, window_bounds = array<i64: 512, 256>}, {pipeline_mode = #tpu.pipeline_mode<synchronous>, transform_indices = @transform_2, window_bounds = array<i64: 1, 256>}, {pipeline_mode = #tpu.pipeline_mode<synchronous>, transform_indices = @transform_3, window_bounds = array<i64: 256, 128>}, {pipeline_mode = #tpu.pipeline_mode<synchronous>, transform_indices = @transform_4, window_bounds = array<i64: 1, 128>}, {pipeline_mode = #tpu.pipeline_mode<synchronous>, transform_indices = @transform_5, window_bounds = array<i64: 128, 128>}, {pipeline_mode = #tpu.pipeline_mode<synchronous>, transform_indices = @transform_6, window_bounds = array<i64: 1, 128>}, {transform_indices = @transform_7, window_bounds = array<i64: 8, 128>}]} {
    %c0_i32 = arith.constant 0 : i32
    %0 = arith.cmpi eq, %arg1, %c0_i32 : i32
    %1 = arith.extui %0 : i1 to i32
    %c0_i32_0 = arith.constant 0 : i32
    %2 = arith.cmpi ne, %1, %c0_i32_0 : i32
    scf.if %2 {
      %cst_9 = arith.constant 0.000000e+00 : f32
      %12 = vector.broadcast %cst_9 : f32 to vector<8x256xf32>
      %c0_10 = arith.constant 0 : index
      %c0_11 = arith.constant 0 : index
      %13 = vector.load %arg10[%c0_10, %c0_11] : memref<8x256xf32, #tpu.memory_space<vmem>>, vector<8x256xf32>
      tpu.vector_store %arg10[%c0_10, %c0_11], %12 {strides = array<i32>} : memref<8x256xf32, #tpu.memory_space<vmem>>, vector<8x256xf32>,
    } else {
    }
    %c0 = arith.constant 0 : index
    %c0_1 = arith.constant 0 : index
    %3 = vector.load %arg10[%c0, %c0_1] : memref<8x256xf32, #tpu.memory_space<vmem>>, vector<8x256xf32>
    %c0_2 = arith.constant 0 : index
    %c0_3 = arith.constant 0 : index
    %4 = vector.load %arg2[%c0_2, %c0_3] : memref<8x512xbf16, #tpu.memory_space<vmem>>, vector<8x512xbf16>
    %c0_4 = arith.constant 0 : index
    %c0_5 = arith.constant 0 : index
    %5 = vector.load %arg3[%c0_4, %c0_5] : memref<512x256xbf16, #tpu.memory_space<vmem>>, vector<512x256xbf16>
    %cst = arith.constant dense<0.000000e+00> : vector<8x256xf32>
    %6 = tpu.matmul %4, %5, %cst {dimension_numbers = #tpu.dot_dimension_numbers<[1], [0], [0], [1], [0, 0, 1, 1], [], []>} : vector<8x512xbf16>, vector<512x256xbf16>, vector<8x256xf32> -> vector<8x256xf32>
    %7 = arith.addf %3, %6 : vector<8x256xf32>
    %c0_6 = arith.constant 0 : index
    %c0_7 = arith.constant 0 : index
    %8 = vector.load %arg10[%c0_6, %c0_7] : memref<8x256xf32, #tpu.memory_space<vmem>>, vector<8x256xf32>
    tpu.vector_store %arg10[%c0_6, %c0_7], %7 {strides = array<i32>} : memref<8x256xf32, #tpu.memory_space<vmem>>, vector<8x256xf32>,
    %c1_i32 = arith.constant 1 : i32
    %9 = arith.cmpi eq, %arg1, %c1_i32 : i32
    %10 = arith.extui %9 : i1 to i32
    %c0_i32_8 = arith.constant 0 : i32
    %11 = arith.cmpi ne, %10, %c0_i32_8 : i32
    scf.if %11 {
      %c0_9 = arith.constant 0 : index
      %c0_10 = arith.constant 0 : index
      %12 = vector.load %arg10[%c0_9, %c0_10] : memref<8x256xf32, #tpu.memory_space<vmem>>, vector<8x256xf32>
      %c0_11 = arith.constant 0 : index
      %c0_12 = arith.constant 0 : index
      %13 = vector.load %arg4[%c0_11, %c0_12] : memref<1x256xf32, #tpu.memory_space<vmem>>, vector<1x256xf32>
      %14 = vector.broadcast %13 : vector<1x256xf32> to vector<8x256xf32>
      %15 = arith.addf %12, %14 : vector<8x256xf32>
      %cst_13 = arith.constant 0.000000e+00 : f32
      %16 = vector.broadcast %cst_13 : f32 to vector<8x256xf32>
      %17 = arith.maximumf %15, %16 : vector<8x256xf32>
      %18 = arith.truncf %17 : vector<8x256xf32> to vector<8x256xbf16>
      %c0_14 = arith.constant 0 : index
      %c0_15 = arith.constant 0 : index
      %19 = vector.load %arg5[%c0_14, %c0_15] : memref<256x128xbf16, #tpu.memory_space<vmem>>, vector<256x128xbf16>
      %cst_16 = arith.constant dense<0.000000e+00> : vector<8x128xf32>
      %20 = tpu.matmul %18, %19, %cst_16 {dimension_numbers = #tpu.dot_dimension_numbers<[1], [0], [0], [1], [0, 0, 1, 1], [], []>} : vector<8x256xbf16>, vector<256x128xbf16>, vector<8x128xf32> -> vector<8x128xf32>
      %c0_17 = arith.constant 0 : index
      %c0_18 = arith.constant 0 : index
      %21 = vector.load %arg6[%c0_17, %c0_18] : memref<1x128xf32, #tpu.memory_space<vmem>>, vector<1x128xf32>
      %22 = vector.broadcast %21 : vector<1x128xf32> to vector<8x128xf32>
      %23 = arith.addf %20, %22 : vector<8x128xf32>
      %cst_19 = arith.constant 0.000000e+00 : f32
      %24 = vector.broadcast %cst_19 : f32 to vector<8x128xf32>
      %25 = arith.maximumf %23, %24 : vector<8x128xf32>
      %26 = arith.truncf %25 : vector<8x128xf32> to vector<8x128xbf16>
      %c0_20 = arith.constant 0 : index
      %c0_21 = arith.constant 0 : index
      %27 = vector.load %arg7[%c0_20, %c0_21] : memref<128x128xbf16, #tpu.memory_space<vmem>>, vector<128x128xbf16>
      %cst_22 = arith.constant dense<0.000000e+00> : vector<8x128xf32>
      %28 = tpu.matmul %26, %27, %cst_22 {dimension_numbers = #tpu.dot_dimension_numbers<[1], [0], [0], [1], [0, 0, 1, 1], [], []>} : vector<8x128xbf16>, vector<128x128xbf16>, vector<8x128xf32> -> vector<8x128xf32>
      %c0_23 = arith.constant 0 : index
      %c0_24 = arith.constant 0 : index
      %29 = vector.load %arg8[%c0_23, %c0_24] : memref<1x128xf32, #tpu.memory_space<vmem>>, vector<1x128xf32>
      %30 = vector.broadcast %29 : vector<1x128xf32> to vector<8x128xf32>
      %31 = arith.addf %28, %30 : vector<8x128xf32>
      %c0_25 = arith.constant 0 : index
      %c0_26 = arith.constant 0 : index
      %32 = vector.load %arg9[%c0_25, %c0_26] : memref<8x128xf32, #tpu.memory_space<vmem>>, vector<8x128xf32>
      tpu.vector_store %arg9[%c0_25, %c0_26], %31 {strides = array<i32>} : memref<8x128xf32, #tpu.memory_space<vmem>>, vector<8x128xf32>,
    } else {
    }
    return
  }
  func.func @transform_0(%arg0: i32, %arg1: i32) -> (i32, i32) {
    %c0_i32 = arith.constant 0 : i32
    return %arg0, %arg1 : i32, i32
  }
  func.func @transform_1(%arg0: i32, %arg1: i32) -> (i32, i32) {
    %c0_i32 = arith.constant 0 : i32
    %c0_i32_0 = arith.constant 0 : i32
    return %arg1, %c0_i32 : i32, i32
  }
  func.func @transform_2(%arg0: i32, %arg1: i32) -> (i32, i32) {
    %c0_i32 = arith.constant 0 : i32
    %c0_i32_0 = arith.constant 0 : i32
    %c0_i32_1 = arith.constant 0 : i32
    return %c0_i32, %c0_i32_0 : i32, i32
  }
  func.func @transform_3(%arg0: i32, %arg1: i32) -> (i32, i32) {
    %c0_i32 = arith.constant 0 : i32
    %c0_i32_0 = arith.constant 0 : i32
    %c0_i32_1 = arith.constant 0 : i32
    return %c0_i32, %c0_i32_0 : i32, i32
  }
  func.func @transform_4(%arg0: i32, %arg1: i32) -> (i32, i32) {
    %c0_i32 = arith.constant 0 : i32
    %c0_i32_0 = arith.constant 0 : i32
    %c0_i32_1 = arith.constant 0 : i32
    return %c0_i32, %c0_i32_0 : i32, i32
  }
  func.func @transform_5(%arg0: i32, %arg1: i32) -> (i32, i32) {
    %c0_i32 = arith.constant 0 : i32
    %c0_i32_0 = arith.constant 0 : i32
    %c0_i32_1 = arith.constant 0 : i32
    return %c0_i32, %c0_i32_0 : i32, i32
  }
  func.func @transform_6(%arg0: i32, %arg1: i32) -> (i32, i32) {
    %c0_i32 = arith.constant 0 : i32
    %c0_i32_0 = arith.constant 0 : i32
    %c0_i32_1 = arith.constant 0 : i32
    return %c0_i32, %c0_i32_0 : i32, i32
  }
  func.func @transform_7(%arg0: i32, %arg1: i32) -> (i32, i32) {
    %c0_i32 = arith.constant 0 : i32
    %c0_i32_0 = arith.constant 0 : i32
    return %arg0, %c0_i32 : i32, i32
  }
}

</mosaic_0001>

<llo_original>
// kernel: tpu_custom_call.1
$region0: #{tpu_custom_call.1}
  #allocation0 [shape = 'u32[]', space=smem, size = 0x4, offset = 0x4, fixed_abs, tag = 'smem constant byte address 0x4 - core index']
  #allocation1 [shape = 'u32[144,128]{1,0:T(1,128)}', space=vmem, size = 0x12000, scoped, tag = 'internal scratch']
  #allocation2 [shape = 'f32[8,256]{1,0:T(8,128)}', space=vmem, size = 0x2000, scoped, tag = 'scratch operand']
  %s0 = inlined_call_operand.hbm [shape: bf16[8,1024], index: 0, kind: input, shape index: {}]
  %s1 = inlined_call_operand.hbm [shape: bf16[1024,256], index: 1, kind: input, shape index: {}]
  %s2 = inlined_call_operand.vmem [shape: f32[1,256], index: 2, kind: input, shape index: {}]
  %s3 = inlined_call_operand.hbm [shape: bf16[256,128], index: 3, kind: input, shape index: {}]
  %s4 = inlined_call_operand.vmem [shape: f32[1,128], index: 4, kind: input, shape index: {}]
  %s5 = inlined_call_operand.hbm [shape: bf16[128,128], index: 5, kind: input, shape index: {}]
  %s6 = inlined_call_operand.vmem [shape: f32[1,128], index: 6, kind: input, shape index: {}]
  %s7 = inlined_call_operand.hbm [shape: f32[8,128], index: 7, kind: output, shape index: {}]
  %s8 = sld [smem:[#allocation0]]
  $region85: #{tpu_custom_call.1} parent=0
    _
  %s10 = ssub.s32 1, %s8
  %s11 = scalar_select 0, %s10, %s8
  $region1: #{tpu_custom_call.1} parent=0
    #allocation3 [shape = 'u8[16384]{0}', space=vmem, size = 0x4000, scoped, tag = 'input window, operand 0']
    #allocation4 [shape = 's32[2]{0}', space=sflag, size = 0x8, scoped, tag = 'scoped memory for tpu_custom_call.1']
    #allocation5 [shape = 's32[2]{0}', space=sflag, size = 0x8, scoped, tag = 'scoped memory for tpu_custom_call.1']
    #allocation6 [shape = 'u8[524288]{0}', space=vmem, size = 0x80000, scoped, tag = 'input window, operand 1']
    #allocation7 [shape = 's32[2]{0}', space=sflag, size = 0x8, scoped, tag = 'scoped memory for tpu_custom_call.1']
    #allocation8 [shape = 'u8[65536]{0}', space=vmem, size = 0x10000, scoped, tag = 'input window, operand 3, single buffered']
    #allocation9 [shape = 'u8[32768]{0}', space=vmem, size = 0x8000, scoped, tag = 'input window, operand 5, single buffered']
    #allocation10 [shape = 's32[1]{0}', space=sflag, size = 0x4, scoped, tag = 'scoped memory for tpu_custom_call.1']
    #allocation11 [shape = 'u8[4096]{0}', space=vmem, size = 0x1000, scoped, tag = 'output window, operand 0, single buffered']
    %12 = vsyncpa [#allocation4], 0
    %s13 = scalar_lea.sflag [#allocation4], 1
    %14 = vsyncpa %s13, 0
    %15 = vsyncpa [#allocation7], 0
    %s16 = scalar_lea.sflag [#allocation7], 1
    %17 = vsyncpa %s16, 0
    %18 = vsyncpa [#allocation10], 0
    %19 = vsyncpa [#allocation5], 0
    loop: start=0, step=1, limit=4
    $region2: #{tpu_custom_call.1} parent=1 // loop_pre_header
      _
    $region3: #{tpu_custom_call.1} parent=1 // loop_header
      %s21 = sphi 0, %s25
      %p22 = scmp.ge.s32.totalorder %s21, 4
      %s28 = sphi 0, %s40
      %s29 = sphi 0, %s36
      %s30 = sphi 0, %s28
      %s31 = sphi 0, %s29
      %s32 = sphi 0, %s30
      %s33 = sphi 0, %s31
      %s45 = sphi 0, %s47
      %s48 = sphi 0, %s45
      %s49 = sphi 0, %s48
      %s65 = sphi 0, %s49
      %s71 = sphi 0, %s73
      %s74 = sphi 0, %s71
      %s75 = sphi 0, %s74
      %s91 = sphi 0, %s75
      %s95 = sphi 0, %s95
      %s97 = sphi 0, %s95
      %s98 = sphi 0, %s97
      %s112 = sphi 0, %s98
      %s116 = sphi 0, %s116
      %s118 = sphi 0, %s116
      %s119 = sphi 0, %s118
      %s133 = sphi 0, %s119
      %s137 = sphi 0, %s137
      %s139 = sphi 0, %s137
      %s140 = sphi 0, %s139
      %s154 = sphi 0, %s140
      %s158 = sphi 0, %s158
      %s160 = sphi 0, %s158
      %s161 = sphi 0, %s160
      %s175 = sphi 0, %s161
      %s179 = sphi 0, %s179
      %s181 = sphi 0, %s179
      %s182 = sphi 0, %s181
      %s196 = sphi 0, %s182
      %s202 = sphi 0, %s204
      %s205 = sphi 0, %s202
      %s206 = sphi 0, %s205
      %s222 = sphi 0, %s206
    $region4: #{tpu_custom_call.1} parent=1 // loop_header_branch
      %24 = sbr.rel (%p22) target = $region8
    $region5: #{tpu_custom_call.1} parent=1 // loop_body
      %s26 = ssub.s32 %s21, 1
      %s27 = ssub.s32 %s21, 2
      %s34 = sadd.s32 1, %s29
      %p35 = scmp.ge.s32.totalorder %s34, 2
      %s36 = scalar_select %p35, 0, %s34
      %s37 = sadd.s32 1, %s28
      %s38 = scalar_select %p35, %s37, %s28
      %p39 = scmp.ge.s32.totalorder %s38, 1
      %s40 = scalar_select %p39, 0, %s38
      %s41 = ssub.s32 %s28, %s40
      %s42 = ssub.s32 %s29, %s36
      %s43 = sor.u32 %s41, %s42
      %p44 = scmp.eq.s32.totalorder %s43, 0
      %s46 = sadd.s32 %s45, 1
      %s47 = scalar_select %p44, %s45, %s46
      %p50 = pneg %p44
      %p51 = scmp.eq.s32.totalorder %s21, 1
      %p52 = por %p50, %p51
      %p53 = scmp.ne.s32.totalorder %s45, %s48
      %p54 = scmp.eq.s32.totalorder %s21, 0
      %p55 = por %p53, %p54
      %p56 = scmp.ne.s32.totalorder %s45, %s48
      %p57 = scmp.eq.s32.totalorder %s26, 1
      %p58 = por %p56, %p57
      %p59 = scmp.ne.s32.totalorder %s48, %s49
      %p60 = scmp.eq.s32.totalorder %s26, 0
      %p61 = por %p59, %p60
      %p62 = scmp.ne.s32.totalorder %s48, %s49
      %p63 = scmp.eq.s32.totalorder %s27, 1
      %p64 = por %p62, %p63
      %p66 = scmp.ne.s32.totalorder %s49, %s65
      %p67 = scmp.eq.s32.totalorder %s27, 0
      %p68 = por %p66, %p67
      %s69 = ssub.s32 %s29, %s36
      %p70 = scmp.eq.s32.totalorder %s69, 0
      %s72 = sadd.s32 %s71, 1
      %s73 = scalar_select %p70, %s71, %s72
      %p76 = pneg %p70
      %p77 = scmp.eq.s32.totalorder %s21, 1
      %p78 = por %p76, %p77
      %p79 = scmp.ne.s32.totalorder %s71, %s74
      %p80 = scmp.eq.s32.totalorder %s21, 0
      %p81 = por %p79, %p80
      %p82 = scmp.ne.s32.totalorder %s71, %s74
      %p83 = scmp.eq.s32.totalorder %s26, 1
      %p84 = por %p82, %p83
      %p85 = scmp.ne.s32.totalorder %s74, %s75
      %p86 = scmp.eq.s32.totalorder %s26, 0
      %p87 = por %p85, %p86
      %p88 = scmp.ne.s32.totalorder %s74, %s75
      %p89 = scmp.eq.s32.totalorder %s27, 1
      %p90 = por %p88, %p89
      %p92 = scmp.ne.s32.totalorder %s75, %s91
      %p93 = scmp.eq.s32.totalorder %s27, 0
      %p94 = por %p92, %p93
      %s96 = sadd.s32 %s95, 1
      %p99 = scmp.eq.s32.totalorder %s21, 1
      %p100 = scmp.ne.s32.totalorder %s95, %s97
      %p101 = scmp.eq.s32.totalorder %s21, 0
      %p102 = por %p100, %p101
      %p103 = scmp.ne.s32.totalorder %s95, %s97
      %p104 = scmp.eq.s32.totalorder %s26, 1
      %p105 = por %p103, %p104
      %p106 = scmp.ne.s32.totalorder %s97, %s98
      %p107 = scmp.eq.s32.totalorder %s26, 0
      %p108 = por %p106, %p107
      %p109 = scmp.ne.s32.totalorder %s97, %s98
      %p110 = scmp.eq.s32.totalorder %s27, 1
      %p111 = por %p109, %p110
      %p113 = scmp.ne.s32.totalorder %s98, %s112
      %p114 = scmp.eq.s32.totalorder %s27, 0
      %p115 = por %p113, %p114
      %s117 = sadd.s32 %s116, 1
      %p120 = scmp.eq.s32.totalorder %s21, 1
      %p121 = scmp.ne.s32.totalorder %s116, %s118
      %p122 = scmp.eq.s32.totalorder %s21, 0
      %p123 = por %p121, %p122
      %p124 = scmp.ne.s32.totalorder %s116, %s118
      %p125 = scmp.eq.s32.totalorder %s26, 1
      %p126 = por %p124, %p125
      %p127 = scmp.ne.s32.totalorder %s118, %s119
      %p128 = scmp.eq.s32.totalorder %s26, 0
      %p129 = por %p127, %p128
      %p130 = scmp.ne.s32.totalorder %s118, %s119
      %p131 = scmp.eq.s32.totalorder %s27, 1
      %p132 = por %p130, %p131
      %p134 = scmp.ne.s32.totalorder %s119, %s133
      %p135 = scmp.eq.s32.totalorder %s27, 0
      %p136 = por %p134, %p135
      %s138 = sadd.s32 %s137, 1
      %p141 = scmp.eq.s32.totalorder %s21, 1
      %p142 = scmp.ne.s32.totalorder %s137, %s139
      %p143 = scmp.eq.s32.totalorder %s21, 0
      %p144 = por %p142, %p143
      %p145 = scmp.ne.s32.totalorder %s137, %s139
      %p146 = scmp.eq.s32.totalorder %s26, 1
      %p147 = por %p145, %p146
      %p148 = scmp.ne.s32.totalorder %s139, %s140
      %p149 = scmp.eq.s32.totalorder %s26, 0
      %p150 = por %p148, %p149
      %p151 = scmp.ne.s32.totalorder %s139, %s140
      %p152 = scmp.eq.s32.totalorder %s27, 1
      %p153 = por %p151, %p152
      %p155 = scmp.ne.s32.totalorder %s140, %s154
      %p156 = scmp.eq.s32.totalorder %s27, 0
      %p157 = por %p155, %p156
      %s159 = sadd.s32 %s158, 1
      %p162 = scmp.eq.s32.totalorder %s21, 1
      %p163 = scmp.ne.s32.totalorder %s158, %s160
      %p164 = scmp.eq.s32.totalorder %s21, 0
      %p165 = por %p163, %p164
      %p166 = scmp.ne.s32.totalorder %s158, %s160
      %p167 = scmp.eq.s32.totalorder %s26, 1
      %p168 = por %p166, %p167
      %p169 = scmp.ne.s32.totalorder %s160, %s161
      %p170 = scmp.eq.s32.totalorder %s26, 0
      %p171 = por %p169, %p170
      %p172 = scmp.ne.s32.totalorder %s160, %s161
      %p173 = scmp.eq.s32.totalorder %s27, 1
      %p174 = por %p172, %p173
      %p176 = scmp.ne.s32.totalorder %s161, %s175
      %p177 = scmp.eq.s32.totalorder %s27, 0
      %p178 = por %p176, %p177
      %s180 = sadd.s32 %s179, 1
      %p183 = scmp.eq.s32.totalorder %s21, 1
      %p184 = scmp.ne.s32.totalorder %s179, %s181
      %p185 = scmp.eq.s32.totalorder %s21, 0
      %p186 = por %p184, %p185
      %p187 = scmp.ne.s32.totalorder %s179, %s181
      %p188 = scmp.eq.s32.totalorder %s26, 1
      %p189 = por %p187, %p188
      %p190 = scmp.ne.s32.totalorder %s181, %s182
      %p191 = scmp.eq.s32.totalorder %s26, 0
      %p192 = por %p190, %p191
      %p193 = scmp.ne.s32.totalorder %s181, %s182
      %p194 = scmp.eq.s32.totalorder %s27, 1
      %p195 = por %p193, %p194
      %p197 = scmp.ne.s32.totalorder %s182, %s196
      %p198 = scmp.eq.s32.totalorder %s27, 0
      %p199 = por %p197, %p198
      %s200 = ssub.s32 %s28, %s40
      %p201 = scmp.eq.s32.totalorder %s200, 0
      %s203 = sadd.s32 %s202, 1
      %s204 = scalar_select %p201, %s202, %s203
      %p207 = pneg %p201
      %p208 = scmp.eq.s32.totalorder %s21, 1
      %p209 = por %p207, %p208
      %p210 = scmp.ne.s32.totalorder %s202, %s205
      %p211 = scmp.eq.s32.totalorder %s21, 0
      %p212 = por %p210, %p211
      %p213 = scmp.ne.s32.totalorder %s202, %s205
      %p214 = scmp.eq.s32.totalorder %s26, 1
      %p215 = por %p213, %p214
      %p216 = scmp.ne.s32.totalorder %s205, %s206
      %p217 = scmp.eq.s32.totalorder %s26, 0
      %p218 = por %p216, %p217
      %p219 = scmp.ne.s32.totalorder %s205, %s206
      %p220 = scmp.eq.s32.totalorder %s27, 1
      %p221 = por %p219, %p220
      %p223 = scmp.ne.s32.totalorder %s206, %s222
      %p224 = scmp.eq.s32.totalorder %s27, 0
      %p225 = por %p223, %p224
      %p226 = scmp.le.s32.totalorder 1, %s21
      %p227 = scmp.lt.s32.totalorder %s21, 3
      %p228 = pnand %p226, %p227
      %p229 = pneg %p228
      // Predicated region
      $region9: #{tpu_custom_call.1} parent=5 // pred_check
        _
      $region10: #{tpu_custom_call.1} parent=5 // pred_check_branch
        %231 = sbr.rel (%p228) target = $region12
      $region11: #{tpu_custom_call.1} parent=5 // pred_region
        %s232 = ssub.s32 %s21, 1
        // Predicated region
        $region13: #{tpu_custom_call.1} parent=11 // pred_check
          %p233 = pneg %p108
        $region14: #{tpu_custom_call.1} parent=11 // pred_check_branch
          %235 = sbr.rel (%p233) target = $region16
        $region15: #{tpu_custom_call.1} parent=11 // pred_region
          _
        $region16: #{tpu_custom_call.1} parent=11 // pred_fallthru
          _
        // Predicated region
        $region17: #{tpu_custom_call.1} parent=11 // pred_check
          %p236 = pneg %p129
        $region18: #{tpu_custom_call.1} parent=11 // pred_check_branch
          %238 = sbr.rel (%p236) target = $region20
        $region19: #{tpu_custom_call.1} parent=11 // pred_region
          %s240 = ssub.s32 2048, 2048
          %241 = vsyncadd [#allocation7], %s240
          %s242 = sshll.u32 [#allocation8], 4
          %s243 = int_to_ptr.vmem [resolvable:$true] %s242
          %248 = dma.hbm_to_vmem [thread:$0]  %s3, 2048, %s243, [#allocation7], 64, 64, 4
        $region20: #{tpu_custom_call.1} parent=11 // pred_fallthru
          _
        // Predicated region
        $region21: #{tpu_custom_call.1} parent=11 // pred_check
          %p249 = pneg %p150
        $region22: #{tpu_custom_call.1} parent=11 // pred_check_branch
          %251 = sbr.rel (%p249) target = $region24
        $region23: #{tpu_custom_call.1} parent=11 // pred_region
          _
        $region24: #{tpu_custom_call.1} parent=11 // pred_fallthru
          _
        // Predicated region
        $region25: #{tpu_custom_call.1} parent=11 // pred_check
          %p252 = pneg %p171
        $region26: #{tpu_custom_call.1} parent=11 // pred_check_branch
          %254 = sbr.rel (%p252) target = $region28
        $region27: #{tpu_custom_call.1} parent=11 // pred_region
          %s256 = ssub.s32 1024, 1024
          %257 = vsyncadd [#allocation10], %s256
          %s258 = sshll.u32 [#allocation9], 4
          %s259 = int_to_ptr.vmem [resolvable:$true] %s258
          %264 = dma.hbm_to_vmem [thread:$0]  %s5, 1024, %s259, [#allocation10], 64, 64, 4
        $region28: #{tpu_custom_call.1} parent=11 // pred_fallthru
          _
        // Predicated region
        $region29: #{tpu_custom_call.1} parent=11 // pred_check
          %p265 = pneg %p192
        $region30: #{tpu_custom_call.1} parent=11 // pred_check_branch
          %267 = sbr.rel (%p265) target = $region32
        $region31: #{tpu_custom_call.1} parent=11 // pred_region
          _
        $region32: #{tpu_custom_call.1} parent=11 // pred_fallthru
          _
      $region12: #{tpu_custom_call.1} parent=5 // pred_fallthru
        _
      %p268 = scmp.lt.s32.totalorder %s21, 2
      // Predicated region
      $region33: #{tpu_custom_call.1} parent=5 // pred_check
        %p269 = pneg %p268
      $region34: #{tpu_custom_call.1} parent=5 // pred_check_branch
        %271 = sbr.rel (%p269) target = $region36
      $region35: #{tpu_custom_call.1} parent=5 // pred_region
        // Predicated region
        $region37: #{tpu_custom_call.1} parent=35 // pred_check
          %p272 = pneg %p55
        $region38: #{tpu_custom_call.1} parent=35 // pred_check_branch
          %274 = sbr.rel (%p272) target = $region40
        $region39: #{tpu_custom_call.1} parent=35 // pred_region
          %s275 = sand.u32 %s45, 1
          %s276 = scalar_lea.sflag [#allocation4], %s275
          %s277 = sand.u32 %s45, 1
          %s278 = smul.addr %s277, 16
          %s279 = scalar_lea.vmem [#allocation3], %s278
          %s280 = smul.u32 4, %s29
          %s282 = ssub.s32 256, 256
          %283 = vsyncadd %s276, %s282
          %s284 = smul.addr %s28, 8
          %s285 = sadd.s32 %s280, %s284
          %s286 = smul.addr %s285, 64
          %s287 = scalar_lea.hbm %s0, %s286
          %s289 = sshll.u32 %s279, 4
          %s290 = int_to_ptr.vmem [resolvable:$true] %s289
          %292 = dma.hbm_to_vmem [thread:$0]  %s287, 256, %s290, %s276
        $region40: #{tpu_custom_call.1} parent=35 // pred_fallthru
          _
        // Predicated region
        $region41: #{tpu_custom_call.1} parent=35 // pred_check
          %p293 = pneg %p81
        $region42: #{tpu_custom_call.1} parent=35 // pred_check_branch
          %295 = sbr.rel (%p293) target = $region44
        $region43: #{tpu_custom_call.1} parent=35 // pred_region
          %s296 = sand.u32 %s21, 1
          %s297 = scalar_lea.sflag [#allocation7], %s296
          %s298 = sand.u32 %s71, 1
          %s299 = smul.addr %s298, 512
          %s300 = scalar_lea.vmem [#allocation6], %s299
          %s301 = smul.u32 64, %s29
          %s303 = ssub.s32 8192, 8192
          %304 = vsyncadd %s297, %s303
          %s305 = smul.addr %s301, 2
          %s306 = smul.addr %s305, 64
          %s307 = scalar_lea.hbm %s1, %s306
          %s308 = sshll.u32 %s300, 4
          %s309 = int_to_ptr.vmem [resolvable:$true] %s308
          %314 = dma.hbm_to_vmem [thread:$0]  %s307, 8192, %s309, %s297, 128, 128, 8
        $region44: #{tpu_custom_call.1} parent=35 // pred_fallthru
          _
      $region36: #{tpu_custom_call.1} parent=5 // pred_fallthru
        _
      %p315 = scmp.le.s32.totalorder 1, %s21
      %p316 = scmp.lt.s32.totalorder %s21, 3
      %p317 = pnand %p315, %p316
      %p318 = pneg %p317
      // Predicated region
      $region45: #{tpu_custom_call.1} parent=5 // pred_check
        _
      $region46: #{tpu_custom_call.1} parent=5 // pred_check_branch
        %320 = sbr.rel (%p317) target = $region48
      $region47: #{tpu_custom_call.1} parent=5 // pred_region
        %s321 = ssub.s32 %s21, 1
        %s322 = sand.u32 %s48, 1
        %s323 = scalar_lea.sflag [#allocation4], %s322
        %s324 = sand.u32 %s48, 1
        %s325 = smul.addr %s324, 16
        %s326 = scalar_lea.vmem [#allocation3], %s325
        // Predicated region
        $region49: #{tpu_custom_call.1} parent=47 // pred_check
          %p327 = pneg %p61
        $region50: #{tpu_custom_call.1} parent=47 // pred_check_branch
          %329 = sbr.rel (%p327) target = $region52
        $region51: #{tpu_custom_call.1} parent=47 // pred_region
          %330 = dma.done %s323, 256
        $region52: #{tpu_custom_call.1} parent=47 // pred_fallthru
          _
        %s331 = sand.u32 %s26, 1
        %s332 = scalar_lea.sflag [#allocation7], %s331
        %s333 = sand.u32 %s74, 1
        %s334 = smul.addr %s333, 512
        %s335 = scalar_lea.vmem [#allocation6], %s334
        // Predicated region
        $region53: #{tpu_custom_call.1} parent=47 // pred_check
          %p336 = pneg %p87
        $region54: #{tpu_custom_call.1} parent=47 // pred_check_branch
          %338 = sbr.rel (%p336) target = $region56
        $region55: #{tpu_custom_call.1} parent=47 // pred_region
          %339 = dma.done %s332, 8192
        $region56: #{tpu_custom_call.1} parent=47 // pred_fallthru
          _
        // Predicated region
        $region57: #{tpu_custom_call.1} parent=47 // pred_check
          %p340 = pneg %p129
        $region58: #{tpu_custom_call.1} parent=47 // pred_check_branch
          %342 = sbr.rel (%p340) target = $region60
        $region59: #{tpu_custom_call.1} parent=47 // pred_region
          %343 = dma.done [#allocation7], 2048
        $region60: #{tpu_custom_call.1} parent=47 // pred_fallthru
          _
        // Predicated region
        $region61: #{tpu_custom_call.1} parent=47 // pred_check
          %p344 = pneg %p171
        $region62: #{tpu_custom_call.1} parent=47 // pred_check_branch
          %346 = sbr.rel (%p344) target = $region64
        $region63: #{tpu_custom_call.1} parent=47 // pred_region
          %347 = dma.done [#allocation10], 1024
        $region64: #{tpu_custom_call.1} parent=47 // pred_fallthru
          _
        %s348 = sand.u32 %s48, 1
        %s349 = scalar_lea.sflag [#allocation4], %s348
        %s350 = sand.u32 %s48, 1
        %s351 = smul.addr %s350, 16
        %s352 = scalar_lea.vmem [#allocation3], %s351
        %p353 = pneg %p61
        %p354 = pneg %p58
        %s355 = sand.u32 %s26, 1
        %s356 = scalar_lea.sflag [#allocation7], %s355
        %s357 = sand.u32 %s74, 1
        %s358 = smul.addr %s357, 512
        %s359 = scalar_lea.vmem [#allocation6], %s358
        %p360 = pneg %p87
        %p361 = pneg %p84
        %p362 = pneg %p108
        %p363 = pneg %p105
        %p364 = pneg %p129
        %p365 = pneg %p126
        %p366 = pneg %p150
        %p367 = pneg %p147
        %p368 = pneg %p171
        %p369 = pneg %p168
        %p370 = pneg %p192
        %p371 = pneg %p189
        %p372 = pneg %p218
        %p373 = pneg %p215
        %s374 = smul.u32 4, %s31
        %s375 = smul.u32 64, %s31
        %p377 = scmp.eq.s32.totalorder %s31, 0
        // Predicated region
        $region65: #{tpu_custom_call.1} parent=47 // pred_check
          %p378 = pneg %p377
        $region66: #{tpu_custom_call.1} parent=47 // pred_check_branch
          %380 = sbr.rel (%p378) target = $region68
        $region67: #{tpu_custom_call.1} parent=47 // pred_region
          %381 = vst [vmem:[#allocation2] sm:$0xff] 0.0
          %382 = vst [vmem:[#allocation2 + $0x8] sm:$0xff] 0.0
        $region68: #{tpu_custom_call.1} parent=47 // pred_fallthru
          _
        %v383 = vld [vmem:[#allocation2] sm:$0xff]
        %v384 = vld [vmem:[#allocation2 + $0x8] sm:$0xff]
        %v385 = vld [vmem:[%s326] sm:$0xff]
        %v386 = vld [vmem:[%s326 + $0x8] sm:$0xff]
        %v387 = vld [vmem:[%s335] sm:$0xff]
        %v388 = vld [vmem:[%s335 + $0x8] sm:$0xff]
        %v389 = vld [vmem:[%s335 + $0x10] sm:$0xff]
        %v390 = vld [vmem:[%s335 + $0x18] sm:$0xff]
        %v391 = vld [vmem:[%s335 + $0x20] sm:$0xff]
        %v392 = vld [vmem:[%s335 + $0x28] sm:$0xff]
        %v393 = vld [vmem:[%s335 + $0x30] sm:$0xff]
        %v394 = vld [vmem:[%s335 + $0x38] sm:$0xff]
        %v395 = vld [vmem:[%s335 + $0x40] sm:$0xff]
        %v396 = vld [vmem:[%s335 + $0x48] sm:$0xff]
        %v397 = vld [vmem:[%s335 + $0x50] sm:$0xff]
        %v398 = vld [vmem:[%s335 + $0x58] sm:$0xff]
        %v399 = vld [vmem:[%s335 + $0x60] sm:$0xff]
        %v400 = vld [vmem:[%s335 + $0x68] sm:$0xff]
        %v401 = vld [vmem:[%s335 + $0x70] sm:$0xff]
        %v402 = vld [vmem:[%s335 + $0x78] sm:$0xff]
        %v403 = vld [vmem:[%s335 + $0x80] sm:$0xff]
        %v404 = vld [vmem:[%s335 + $0x88] sm:$0xff]
        %v405 = vld [vmem:[%s335 + $0x90] sm:$0xff]
        %v406 = vld [vmem:[%s335 + $0x98] sm:$0xff]
        %v407 = vld [vmem:[%s335 + $0xa0] sm:$0xff]
        %v408 = vld [vmem:[%s335 + $0xa8] sm:$0xff]
        %v409 = vld [vmem:[%s335 + $0xb0] sm:$0xff]
        %v410 = vld [vmem:[%s335 + $0xb8] sm:$0xff]
        %v411 = vld [vmem:[%s335 + $0xc0] sm:$0xff]
        %v412 = vld [vmem:[%s335 + $0xc8] sm:$0xff]
        %v413 = vld [vmem:[%s335 + $0xd0] sm:$0xff]
        %v414 = vld [vmem:[%s335 + $0xd8] sm:$0xff]
        %v415 = vld [vmem:[%s335 + $0xe0] sm:$0xff]
        %v416 = vld [vmem:[%s335 + $0xe8] sm:$0xff]
        %v417 = vld [vmem:[%s335 + $0xf0] sm:$0xff]
        %v418 = vld [vmem:[%s335 + $0xf8] sm:$0xff]
        %v419 = vld [vmem:[%s335 + $0x100] sm:$0xff]
        %v420 = vld [vmem:[%s335 + $0x108] sm:$0xff]
        %v421 = vld [vmem:[%s335 + $0x110] sm:$0xff]
        %v422 = vld [vmem:[%s335 + $0x118] sm:$0xff]
        %v423 = vld [vmem:[%s335 + $0x120] sm:$0xff]
        %v424 = vld [vmem:[%s335 + $0x128] sm:$0xff]
        %v425 = vld [vmem:[%s335 + $0x130] sm:$0xff]
        %v426 = vld [vmem:[%s335 + $0x138] sm:$0xff]
        %v427 = vld [vmem:[%s335 + $0x140] sm:$0xff]
        %v428 = vld [vmem:[%s335 + $0x148] sm:$0xff]
        %v429 = vld [vmem:[%s335 + $0x150] sm:$0xff]
        %v430 = vld [vmem:[%s335 + $0x158] sm:$0xff]
        %v431 = vld [vmem:[%s335 + $0x160] sm:$0xff]
        %v432 = vld [vmem:[%s335 + $0x168] sm:$0xff]
        %v433 = vld [vmem:[%s335 + $0x170] sm:$0xff]
        %v434 = vld [vmem:[%s335 + $0x178] sm:$0xff]
        %v435 = vld [vmem:[%s335 + $0x180] sm:$0xff]
        %v436 = vld [vmem:[%s335 + $0x188] sm:$0xff]
        %v437 = vld [vmem:[%s335 + $0x190] sm:$0xff]
        %v438 = vld [vmem:[%s335 + $0x198] sm:$0xff]
        %v439 = vld [vmem:[%s335 + $0x1a0] sm:$0xff]
        %v440 = vld [vmem:[%s335 + $0x1a8] sm:$0xff]
        %v441 = vld [vmem:[%s335 + $0x1b0] sm:$0xff]
        %v442 = vld [vmem:[%s335 + $0x1b8] sm:$0xff]
        %v443 = vld [vmem:[%s335 + $0x1c0] sm:$0xff]
        %v444 = vld [vmem:[%s335 + $0x1c8] sm:$0xff]
        %v445 = vld [vmem:[%s335 + $0x1d0] sm:$0xff]
        %v446 = vld [vmem:[%s335 + $0x1d8] sm:$0xff]
        %v447 = vld [vmem:[%s335 + $0x1e0] sm:$0xff]
        %v448 = vld [vmem:[%s335 + $0x1e8] sm:$0xff]
        %v449 = vld [vmem:[%s335 + $0x1f0] sm:$0xff]
        %v450 = vld [vmem:[%s335 + $0x1f8] sm:$0xff]
        %v453 = vunpack.c.l.b16 %v385
        %v454 = vunpack.c.h.b16 %v385
        %v455 = vunpack.c.l.b16 %v386
        %v456 = vunpack.c.h.b16 %v386
        %v457 = vpack.c.b16 %v453, %v453
        %v458 = vpack.c.b16 %v454, %v454
        %v459 = vpack.c.b16 %v455, %v455
        %v460 = vpack.c.b16 %v456, %v456
        %v529 = vunpack.c.l.b16 %v387
        %v530 = vunpack.c.h.b16 %v387
        %v531 = vunpack.c.l.b16 %v388
        %v532 = vunpack.c.h.b16 %v388
        %v533 = vunpack.c.l.b16 %v389
        %v534 = vunpack.c.h.b16 %v389
        %v535 = vunpack.c.l.b16 %v390
        %v536 = vunpack.c.h.b16 %v390
        %v537 = vunpack.c.l.b16 %v391
        %v538 = vunpack.c.h.b16 %v391
        %v539 = vunpack.c.l.b16 %v392
        %v540 = vunpack.c.h.b16 %v392
        %v541 = vunpack.c.l.b16 %v393
        %v542 = vunpack.c.h.b16 %v393
        %v543 = vunpack.c.l.b16 %v394
        %v544 = vunpack.c.h.b16 %v394
        %v545 = vunpack.c.l.b16 %v395
        %v546 = vunpack.c.h.b16 %v395
        %v547 = vunpack.c.l.b16 %v396
        %v548 = vunpack.c.h.b16 %v396
        %v549 = vunpack.c.l.b16 %v397
        %v550 = vunpack.c.h.b16 %v397
        %v551 = vunpack.c.l.b16 %v398
        %v552 = vunpack.c.h.b16 %v398
        %v553 = vunpack.c.l.b16 %v399
        %v554 = vunpack.c.h.b16 %v399
        %v555 = vunpack.c.l.b16 %v400
        %v556 = vunpack.c.h.b16 %v400
        %v557 = vunpack.c.l.b16 %v401
        %v558 = vunpack.c.h.b16 %v401
        %v559 = vunpack.c.l.b16 %v402
        %v560 = vunpack.c.h.b16 %v402
        %v561 = vunpack.c.l.b16 %v403
        %v562 = vunpack.c.h.b16 %v403
        %v563 = vunpack.c.l.b16 %v404
        %v564 = vunpack.c.h.b16 %v404
        %v565 = vunpack.c.l.b16 %v405
        %v566 = vunpack.c.h.b16 %v405
        %v567 = vunpack.c.l.b16 %v406
        %v568 = vunpack.c.h.b16 %v406
        %v569 = vunpack.c.l.b16 %v407
        %v570 = vunpack.c.h.b16 %v407
        %v571 = vunpack.c.l.b16 %v408
        %v572 = vunpack.c.h.b16 %v408
        %v573 = vunpack.c.l.b16 %v409
        %v574 = vunpack.c.h.b16 %v409
        %v575 = vunpack.c.l.b16 %v410
        %v576 = vunpack.c.h.b16 %v410
        %v577 = vunpack.c.l.b16 %v411
        %v578 = vunpack.c.h.b16 %v411
        %v579 = vunpack.c.l.b16 %v412
        %v580 = vunpack.c.h.b16 %v412
        %v581 = vunpack.c.l.b16 %v413
        %v582 = vunpack.c.h.b16 %v413
        %v583 = vunpack.c.l.b16 %v414
        %v584 = vunpack.c.h.b16 %v414
        %v585 = vunpack.c.l.b16 %v415
        %v586 = vunpack.c.h.b16 %v415
        %v587 = vunpack.c.l.b16 %v416
        %v588 = vunpack.c.h.b16 %v416
        %v589 = vunpack.c.l.b16 %v417
        %v590 = vunpack.c.h.b16 %v417
        %v591 = vunpack.c.l.b16 %v418
        %v592 = vunpack.c.h.b16 %v418
        %v593 = vunpack.c.l.b16 %v419
        %v594 = vunpack.c.h.b16 %v419
        %v595 = vunpack.c.l.b16 %v420
        %v596 = vunpack.c.h.b16 %v420
        %v597 = vunpack.c.l.b16 %v421
        %v598 = vunpack.c.h.b16 %v421
        %v599 = vunpack.c.l.b16 %v422
        %v600 = vunpack.c.h.b16 %v422
        %v601 = vunpack.c.l.b16 %v423
        %v602 = vunpack.c.h.b16 %v423
        %v603 = vunpack.c.l.b16 %v424
        %v604 = vunpack.c.h.b16 %v424
        %v605 = vunpack.c.l.b16 %v425
        %v606 = vunpack.c.h.b16 %v425
        %v607 = vunpack.c.l.b16 %v426
        %v608 = vunpack.c.h.b16 %v426
        %v609 = vunpack.c.l.b16 %v427
        %v610 = vunpack.c.h.b16 %v427
        %v611 = vunpack.c.l.b16 %v428
        %v612 = vunpack.c.h.b16 %v428
        %v613 = vunpack.c.l.b16 %v429
        %v614 = vunpack.c.h.b16 %v429
        %v615 = vunpack.c.l.b16 %v430
        %v616 = vunpack.c.h.b16 %v430
        %v617 = vunpack.c.l.b16 %v431
        %v618 = vunpack.c.h.b16 %v431
        %v619 = vunpack.c.l.b16 %v432
        %v620 = vunpack.c.h.b16 %v432
        %v621 = vunpack.c.l.b16 %v433
        %v622 = vunpack.c.h.b16 %v433
        %v623 = vunpack.c.l.b16 %v434
        %v624 = vunpack.c.h.b16 %v434
        %v625 = vunpack.c.l.b16 %v435
        %v626 = vunpack.c.h.b16 %v435
        %v627 = vunpack.c.l.b16 %v436
        %v628 = vunpack.c.h.b16 %v436
        %v629 = vunpack.c.l.b16 %v437
        %v630 = vunpack.c.h.b16 %v437
        %v631 = vunpack.c.l.b16 %v438
        %v632 = vunpack.c.h.b16 %v438
        %v633 = vunpack.c.l.b16 %v439
        %v634 = vunpack.c.h.b16 %v439
        %v635 = vunpack.c.l.b16 %v440
        %v636 = vunpack.c.h.b16 %v440
        %v637 = vunpack.c.l.b16 %v441
        %v638 = vunpack.c.h.b16 %v441
        %v639 = vunpack.c.l.b16 %v442
        %v640 = vunpack.c.h.b16 %v442
        %v641 = vunpack.c.l.b16 %v443
        %v642 = vunpack.c.h.b16 %v443
        %v643 = vunpack.c.l.b16 %v444
        %v644 = vunpack.c.h.b16 %v444
        %v645 = vunpack.c.l.b16 %v445
        %v646 = vunpack.c.h.b16 %v445
        %v647 = vunpack.c.l.b16 %v446
        %v648 = vunpack.c.h.b16 %v446
        %v649 = vunpack.c.l.b16 %v447
        %v650 = vunpack.c.h.b16 %v447
        %v651 = vunpack.c.l.b16 %v448
        %v652 = vunpack.c.h.b16 %v448
        %v653 = vunpack.c.l.b16 %v449
        %v654 = vunpack.c.h.b16 %v449
        %v655 = vunpack.c.l.b16 %v450
        %v656 = vunpack.c.h.b16 %v450
        %v657 = vpack.c.b16 %v531, %v529
        %v658 = vpack.c.b16 %v532, %v530
        %v659 = vpack.c.b16 %v535, %v533
        %v660 = vpack.c.b16 %v536, %v534
        %v661 = vpack.c.b16 %v539, %v537
        %v662 = vpack.c.b16 %v540, %v538
        %v663 = vpack.c.b16 %v543, %v541
        %v664 = vpack.c.b16 %v544, %v542
        %v665 = vpack.c.b16 %v547, %v545
        %v666 = vpack.c.b16 %v548, %v546
        %v667 = vpack.c.b16 %v551, %v549
        %v668 = vpack.c.b16 %v552, %v550
        %v669 = vpack.c.b16 %v555, %v553
        %v670 = vpack.c.b16 %v556, %v554
        %v671 = vpack.c.b16 %v559, %v557
        %v672 = vpack.c.b16 %v560, %v558
        %v673 = vpack.c.b16 %v563, %v561
        %v674 = vpack.c.b16 %v564, %v562
        %v675 = vpack.c.b16 %v567, %v565
        %v676 = vpack.c.b16 %v568, %v566
        %v677 = vpack.c.b16 %v571, %v569
        %v678 = vpack.c.b16 %v572, %v570
        %v679 = vpack.c.b16 %v575, %v573
        %v680 = vpack.c.b16 %v576, %v574
        %v681 = vpack.c.b16 %v579, %v577
        %v682 = vpack.c.b16 %v580, %v578
        %v683 = vpack.c.b16 %v583, %v581
        %v684 = vpack.c.b16 %v584, %v582
        %v685 = vpack.c.b16 %v587, %v585
        %v686 = vpack.c.b16 %v588, %v586
        %v687 = vpack.c.b16 %v591, %v589
        %v688 = vpack.c.b16 %v592, %v590
        %v689 = vpack.c.b16 %v595, %v593
        %v690 = vpack.c.b16 %v596, %v594
        %v691 = vpack.c.b16 %v599, %v597
        %v692 = vpack.c.b16 %v600, %v598
        %v693 = vpack.c.b16 %v603, %v601
        %v694 = vpack.c.b16 %v604, %v602
        %v695 = vpack.c.b16 %v607, %v605
        %v696 = vpack.c.b16 %v608, %v606
        %v697 = vpack.c.b16 %v611, %v609
        %v698 = vpack.c.b16 %v612, %v610
        %v699 = vpack.c.b16 %v615, %v613
        %v700 = vpack.c.b16 %v616, %v614
        %v701 = vpack.c.b16 %v619, %v617
        %v702 = vpack.c.b16 %v620, %v618
        %v703 = vpack.c.b16 %v623, %v621
        %v704 = vpack.c.b16 %v624, %v622
        %v705 = vpack.c.b16 %v627, %v625
        %v706 = vpack.c.b16 %v628, %v626
        %v707 = vpack.c.b16 %v631, %v629
        %v708 = vpack.c.b16 %v632, %v630
        %v709 = vpack.c.b16 %v635, %v633
        %v710 = vpack.c.b16 %v636, %v634
        %v711 = vpack.c.b16 %v639, %v637
        %v712 = vpack.c.b16 %v640, %v638
        %v713 = vpack.c.b16 %v643, %v641
        %v714 = vpack.c.b16 %v644, %v642
        %v715 = vpack.c.b16 %v647, %v645
        %v716 = vpack.c.b16 %v648, %v646
        %v717 = vpack.c.b16 %v651, %v649
        %v718 = vpack.c.b16 %v652, %v650
        %v719 = vpack.c.b16 %v655, %v653
        %v720 = vpack.c.b16 %v656, %v654
        %785 = vmatprep.subr.bf16.mxu0 %v658
        %786 = vmatpush1.bf16.msra.mxu0 %v657
        %787 = vmatprep.subr.bf16.mxu0 %v660
        %788 = vmatpush1.bf16.msra.mxu0 %v659
        %789 = vmatprep.subr.bf16.mxu0 %v662
        %790 = vmatpush1.bf16.msra.mxu0 %v661
        %791 = vmatprep.subr.bf16.mxu0 %v664
        %792 = vmatpush1.bf16.msra.mxu0 %v663
        %793 = vmatprep.subr.bf16.mxu0 %v666
        %794 = vmatpush1.bf16.msra.mxu0 %v665
        %795 = vmatprep.subr.bf16.mxu0 %v668
        %796 = vmatpush1.bf16.msra.mxu0 %v667
        %797 = vmatprep.subr.bf16.mxu0 %v670
        %798 = vmatpush1.bf16.msra.mxu0 %v669
        %799 = vmatprep.subr.bf16.mxu0 %v672
        %800 = vmatpush1.bf16.msra.mxu0 %v671
        %801 = vmatprep.subr.bf16.mxu0 %v674
        %802 = vmatpush1.bf16.msra.mxu0 %v673
        %803 = vmatprep.subr.bf16.mxu0 %v676
        %804 = vmatpush1.bf16.msra.mxu0 %v675
        %805 = vmatprep.subr.bf16.mxu0 %v678
        %806 = vmatpush1.bf16.msra.mxu0 %v677
        %807 = vmatprep.subr.bf16.mxu0 %v680
        %808 = vmatpush1.bf16.msra.mxu0 %v679
        %809 = vmatprep.subr.bf16.mxu0 %v682
        %810 = vmatpush1.bf16.msra.mxu0 %v681
        %811 = vmatprep.subr.bf16.mxu0 %v684
        %812 = vmatpush1.bf16.msra.mxu0 %v683
        %813 = vmatprep.subr.bf16.mxu0 %v686
        %814 = vmatpush1.bf16.msra.mxu0 %v685
        %815 = vmatprep.subr.bf16.mxu0 %v688
        %816 = vmatpush1.bf16.msra.mxu0 %v687
        %817 = vmatprep.mubr.bf16.mxu0 %v458
        %818 = vmatmul.mubr.bf16.gmra.mrb[0].mxu0 %v457
        %v819 = vpop.f32.mrb[0].mxu0
        %v820 = vadd.f32 0.0, %v819
        %v821 = vpop.f32.mrb[0].mxu0
        %v822 = vadd.f32 0.0, %v821
        %v823 = vpop.f32.mrb[0].mxu0
        %v824 = vpop.f32.mrb[0].mxu0
        %825 = vdwg.mxu0
        %826 = vmatprep.subr.bf16.mxu0 %v690
        %827 = vmatpush1.bf16.msra.mxu0 %v689
        %828 = vmatprep.subr.bf16.mxu0 %v692
        %829 = vmatpush1.bf16.msra.mxu0 %v691
        %830 = vmatprep.subr.bf16.mxu0 %v694
        %831 = vmatpush1.bf16.msra.mxu0 %v693
        %832 = vmatprep.subr.bf16.mxu0 %v696
        %833 = vmatpush1.bf16.msra.mxu0 %v695
        %834 = vmatprep.subr.bf16.mxu0 %v698
        %835 = vmatpush1.bf16.msra.mxu0 %v697
        %836 = vmatprep.subr.bf16.mxu0 %v700
        %837 = vmatpush1.bf16.msra.mxu0 %v699
        %838 = vmatprep.subr.bf16.mxu0 %v702
        %839 = vmatpush1.bf16.msra.mxu0 %v701
        %840 = vmatprep.subr.bf16.mxu0 %v704
        %841 = vmatpush1.bf16.msra.mxu0 %v703
        %842 = vmatprep.subr.bf16.mxu0 %v706
        %843 = vmatpush1.bf16.msra.mxu0 %v705
        %844 = vmatprep.subr.bf16.mxu0 %v708
        %845 = vmatpush1.bf16.msra.mxu0 %v707
        %846 = vmatprep.subr.bf16.mxu0 %v710
        %847 = vmatpush1.bf16.msra.mxu0 %v709
        %848 = vmatprep.subr.bf16.mxu0 %v712
        %849 = vmatpush1.bf16.msra.mxu0 %v711
        %850 = vmatprep.subr.bf16.mxu0 %v714
        %851 = vmatpush1.bf16.msra.mxu0 %v713
        %852 = vmatprep.subr.bf16.mxu0 %v716
        %853 = vmatpush1.bf16.msra.mxu0 %v715
        %854 = vmatprep.subr.bf16.mxu0 %v718
        %855 = vmatpush1.bf16.msra.mxu0 %v717
        %856 = vmatprep.subr.bf16.mxu0 %v720
        %857 = vmatpush1.bf16.msra.mxu0 %v719
        %858 = vmatprep.mubr.bf16.mxu0 %v460
        %859 = vmatmul.mubr.bf16.gmra.mrb[0].mxu0 %v459
        %v860 = vpop.f32.mrb[0].mxu0
        %v861 = vadd.f32 %v820, %v860
        %v862 = vpop.f32.mrb[0].mxu0
        %v863 = vadd.f32 %v822, %v862
        %v864 = vpop.f32.mrb[0].mxu0
        %v865 = vpop.f32.mrb[0].mxu0
        %866 = vdwg.mxu0
        %v867 = vadd.f32 %v383, %v861
        %v868 = vadd.f32 %v384, %v863
        %869 = vst [vmem:[#allocation2] sm:$0xff] %v867
        %870 = vst [vmem:[#allocation2 + $0x8] sm:$0xff] %v868
        %p871 = scmp.eq.s32.totalorder %s31, 1
        // Predicated region
        $region69: #{tpu_custom_call.1} parent=47 // pred_check
          %p872 = pneg %p871
        $region70: #{tpu_custom_call.1} parent=47 // pred_check_branch
          %874 = sbr.rel (%p872) target = $region72
        $region71: #{tpu_custom_call.1} parent=47 // pred_region
          %v875 = vld [vmem:[#allocation2] sm:$0xff]
          %v876 = vld [vmem:[#allocation2 + $0x8] sm:$0xff]
          %v877 = vld [vmem:[%s2] sm:$0x3]
          %v879 = vlaneseq
          %v880 = vshrl.u32 %v879, 7
          %v881 = vsub.s32 0, %v880
          %v882 = vrot.slane %v877, %v881
          %v883 = vlaneseq
          %v884 = vshrl.u32 %v883, 7
          %v885 = vsub.s32 1, %v884
          %v886 = vrot.slane %v877, %v885
          %v889 = vadd.f32 %v875, %v882
          %v890 = vadd.f32 %v876, %v886
          %v891 = vmax.f32 %v889, 0.0
          %v892 = vmax.f32 %v890, 0.0
          %v893 = vpack.c.bf16 %v891, %v891
          %v894 = vpack.c.bf16 %v892, %v892
          %v895 = vld [vmem:[#allocation8] sm:$0xf]
          %v896 = vld [vmem:[#allocation8 + $0x4] sm:$0xf]
          %v897 = vld [vmem:[#allocation8 + $0x8] sm:$0xf]
          %v898 = vld [vmem:[#allocation8 + $0xc] sm:$0xf]
          %v899 = vld [vmem:[#allocation8 + $0x10] sm:$0xf]
          %v900 = vld [vmem:[#allocation8 + $0x14] sm:$0xf]
          %v901 = vld [vmem:[#allocation8 + $0x18] sm:$0xf]
          %v902 = vld [vmem:[#allocation8 + $0x1c] sm:$0xf]
          %v903 = vld [vmem:[#allocation8 + $0x20] sm:$0xf]
          %v904 = vld [vmem:[#allocation8 + $0x24] sm:$0xf]
          %v905 = vld [vmem:[#allocation8 + $0x28] sm:$0xf]
          %v906 = vld [vmem:[#allocation8 + $0x2c] sm:$0xf]
          %v907 = vld [vmem:[#allocation8 + $0x30] sm:$0xf]
          %v908 = vld [vmem:[#allocation8 + $0x34] sm:$0xf]
          %v909 = vld [vmem:[#allocation8 + $0x38] sm:$0xf]
          %v910 = vld [vmem:[#allocation8 + $0x3c] sm:$0xf]
          %v911 = vld [vmem:[#allocation8 + $0x40] sm:$0xf]
          %v912 = vld [vmem:[#allocation8 + $0x44] sm:$0xf]
          %v913 = vld [vmem:[#allocation8 + $0x48] sm:$0xf]
          %v914 = vld [vmem:[#allocation8 + $0x4c] sm:$0xf]
          %v915 = vld [vmem:[#allocation8 + $0x50] sm:$0xf]
          %v916 = vld [vmem:[#allocation8 + $0x54] sm:$0xf]
          %v917 = vld [vmem:[#allocation8 + $0x58] sm:$0xf]
          %v918 = vld [vmem:[#allocation8 + $0x5c] sm:$0xf]
          %v919 = vld [vmem:[#allocation8 + $0x60] sm:$0xf]
          %v920 = vld [vmem:[#allocation8 + $0x64] sm:$0xf]
          %v921 = vld [vmem:[#allocation8 + $0x68] sm:$0xf]
          %v922 = vld [vmem:[#allocation8 + $0x6c] sm:$0xf]
          %v923 = vld [vmem:[#allocation8 + $0x70] sm:$0xf]
          %v924 = vld [vmem:[#allocation8 + $0x74] sm:$0xf]
          %v925 = vld [vmem:[#allocation8 + $0x78] sm:$0xf]
          %v926 = vld [vmem:[#allocation8 + $0x7c] sm:$0xf]
          %v927 = vld [vmem:[%s4] sm:$0x1]
          %v929 = vlaneseq
          %v930 = vshrl.u32 %v929, 7
          %v931 = vsub.s32 0, %v930
          %v932 = vrot.slane %v927, %v931
          %v966 = vunpack.c.l.b16 %v895
          %v967 = vunpack.c.l.b16 %v896
          %v968 = vunpack.c.l.b16 %v897
          %v969 = vunpack.c.l.b16 %v898
          %v970 = vunpack.c.l.b16 %v899
          %v971 = vunpack.c.l.b16 %v900
          %v972 = vunpack.c.l.b16 %v901
          %v973 = vunpack.c.l.b16 %v902
          %v974 = vunpack.c.l.b16 %v903
          %v975 = vunpack.c.l.b16 %v904
          %v976 = vunpack.c.l.b16 %v905
          %v977 = vunpack.c.l.b16 %v906
          %v978 = vunpack.c.l.b16 %v907
          %v979 = vunpack.c.l.b16 %v908
          %v980 = vunpack.c.l.b16 %v909
          %v981 = vunpack.c.l.b16 %v910
          %v982 = vunpack.c.l.b16 %v911
          %v983 = vunpack.c.l.b16 %v912
          %v984 = vunpack.c.l.b16 %v913
          %v985 = vunpack.c.l.b16 %v914
          %v986 = vunpack.c.l.b16 %v915
          %v987 = vunpack.c.l.b16 %v916
          %v988 = vunpack.c.l.b16 %v917
          %v989 = vunpack.c.l.b16 %v918
          %v990 = vunpack.c.l.b16 %v919
          %v991 = vunpack.c.l.b16 %v920
          %v992 = vunpack.c.l.b16 %v921
          %v993 = vunpack.c.l.b16 %v922
          %v994 = vunpack.c.l.b16 %v923
          %v995 = vunpack.c.l.b16 %v924
          %v996 = vunpack.c.l.b16 %v925
          %v997 = vunpack.c.l.b16 %v926
          %v998 = vpack.c.b16 %v967, %v966
          %v999 = vpack.c.b16 %v969, %v968
          %v1000 = vpack.c.b16 %v971, %v970
          %v1001 = vpack.c.b16 %v973, %v972
          %v1002 = vpack.c.b16 %v975, %v974
          %v1003 = vpack.c.b16 %v977, %v976
          %v1004 = vpack.c.b16 %v979, %v978
          %v1005 = vpack.c.b16 %v981, %v980
          %v1006 = vpack.c.b16 %v983, %v982
          %v1007 = vpack.c.b16 %v985, %v984
          %v1008 = vpack.c.b16 %v987, %v986
          %v1009 = vpack.c.b16 %v989, %v988
          %v1010 = vpack.c.b16 %v991, %v990
          %v1011 = vpack.c.b16 %v993, %v992
          %v1012 = vpack.c.b16 %v995, %v994
          %v1013 = vpack.c.b16 %v997, %v996
          %1030 = vmatprep.subr.bf16.mxu0 0
          %1031 = vmatpush1.bf16.msra.mxu0 %v998
          %1032 = vmatprep.subr.bf16.mxu0 0
          %1033 = vmatpush1.bf16.msra.mxu0 %v999
          %1034 = vmatprep.subr.bf16.mxu0 0
          %1035 = vmatpush1.bf16.msra.mxu0 %v1000
          %1036 = vmatprep.subr.bf16.mxu0 0
          %1037 = vmatpush1.bf16.msra.mxu0 %v1001
          %1038 = vmatprep.subr.bf16.mxu0 0
          %1039 = vmatpush1.bf16.msra.mxu0 %v1002
          %1040 = vmatprep.subr.bf16.mxu0 0
          %1041 = vmatpush1.bf16.msra.mxu0 %v1003
          %1042 = vmatprep.subr.bf16.mxu0 0
          %1043 = vmatpush1.bf16.msra.mxu0 %v1004
          %1044 = vmatprep.subr.bf16.mxu0 0
          %1045 = vmatpush1.bf16.msra.mxu0 %v1005
          %1046 = vmatprep.subr.bf16.mxu0 0
          %1047 = vmatpush1.bf16.msra.mxu0 %v1006
          %1048 = vmatprep.subr.bf16.mxu0 0
          %1049 = vmatpush1.bf16.msra.mxu0 %v1007
          %1050 = vmatprep.subr.bf16.mxu0 0
          %1051 = vmatpush1.bf16.msra.mxu0 %v1008
          %1052 = vmatprep.subr.bf16.mxu0 0
          %1053 = vmatpush1.bf16.msra.mxu0 %v1009
          %1054 = vmatprep.subr.bf16.mxu0 0
          %1055 = vmatpush1.bf16.msra.mxu0 %v1010
          %1056 = vmatprep.subr.bf16.mxu0 0
          %1057 = vmatpush1.bf16.msra.mxu0 %v1011
          %1058 = vmatprep.subr.bf16.mxu0 0
          %1059 = vmatpush1.bf16.msra.mxu0 %v1012
          %1060 = vmatprep.subr.bf16.mxu0 0
          %1061 = vmatpush1.bf16.msra.mxu0 %v1013
          %1062 = vmatprep.mubr.bf16.mxu0 %v894
          %1063 = vmatmul.mubr.bf16.gmra.mrb[0].mxu0 %v893
          %v1064 = vpop.f32.mrb[0].mxu0
          %v1065 = vadd.f32 %v932, %v1064
          %v1066 = vpop.f32.mrb[0].mxu0
          %v1067 = vpop.f32.mrb[0].mxu0
          %v1068 = vpop.f32.mrb[0].mxu0
          %1069 = vdwg.mxu0
          %v1070 = vmax.f32 %v1065, 0.0
          %v1071 = vpack.c.bf16 %v1070, %v1070
          %v1072 = vld [vmem:[#allocation9] sm:$0xf]
          %v1073 = vld [vmem:[#allocation9 + $0x4] sm:$0xf]
          %v1074 = vld [vmem:[#allocation9 + $0x8] sm:$0xf]
          %v1075 = vld [vmem:[#allocation9 + $0xc] sm:$0xf]
          %v1076 = vld [vmem:[#allocation9 + $0x10] sm:$0xf]
          %v1077 = vld [vmem:[#allocation9 + $0x14] sm:$0xf]
          %v1078 = vld [vmem:[#allocation9 + $0x18] sm:$0xf]
          %v1079 = vld [vmem:[#allocation9 + $0x1c] sm:$0xf]
          %v1080 = vld [vmem:[#allocation9 + $0x20] sm:$0xf]
          %v1081 = vld [vmem:[#allocation9 + $0x24] sm:$0xf]
          %v1082 = vld [vmem:[#allocation9 + $0x28] sm:$0xf]
          %v1083 = vld [vmem:[#allocation9 + $0x2c] sm:$0xf]
          %v1084 = vld [vmem:[#allocation9 + $0x30] sm:$0xf]
          %v1085 = vld [vmem:[#allocation9 + $0x34] sm:$0xf]
          %v1086 = vld [vmem:[#allocation9 + $0x38] sm:$0xf]
          %v1087 = vld [vmem:[#allocation9 + $0x3c] sm:$0xf]
          %v1088 = vld [vmem:[%s6] sm:$0x1]
          %v1090 = vlaneseq
          %v1091 = vshrl.u32 %v1090, 7
          %v1092 = vsub.s32 0, %v1091
          %v1093 = vrot.slane %v1088, %v1092
          %v1111 = vunpack.c.l.b16 %v1072
          %v1112 = vunpack.c.l.b16 %v1073
          %v1113 = vunpack.c.l.b16 %v1074
          %v1114 = vunpack.c.l.b16 %v1075
          %v1115 = vunpack.c.l.b16 %v1076
          %v1116 = vunpack.c.l.b16 %v1077
          %v1117 = vunpack.c.l.b16 %v1078
          %v1118 = vunpack.c.l.b16 %v1079
          %v1119 = vunpack.c.l.b16 %v1080
          %v1120 = vunpack.c.l.b16 %v1081
          %v1121 = vunpack.c.l.b16 %v1082
          %v1122 = vunpack.c.l.b16 %v1083
          %v1123 = vunpack.c.l.b16 %v1084
          %v1124 = vunpack.c.l.b16 %v1085
          %v1125 = vunpack.c.l.b16 %v1086
          %v1126 = vunpack.c.l.b16 %v1087
          %v1127 = vpack.c.b16 %v1112, %v1111
          %v1128 = vpack.c.b16 %v1114, %v1113
          %v1129 = vpack.c.b16 %v1116, %v1115
          %v1130 = vpack.c.b16 %v1118, %v1117
          %v1131 = vpack.c.b16 %v1120, %v1119
          %v1132 = vpack.c.b16 %v1122, %v1121
          %v1133 = vpack.c.b16 %v1124, %v1123
          %v1134 = vpack.c.b16 %v1126, %v1125
          %1143 = vmatprep.subr.bf16.mxu0 0
          %1144 = vmatpush1.bf16.msra.mxu0 %v1127
          %1145 = vmatprep.subr.bf16.mxu0 0
          %1146 = vmatpush1.bf16.msra.mxu0 %v1128
          %1147 = vmatprep.subr.bf16.mxu0 0
          %1148 = vmatpush1.bf16.msra.mxu0 %v1129
          %1149 = vmatprep.subr.bf16.mxu0 0
          %1150 = vmatpush1.bf16.msra.mxu0 %v1130
          %1151 = vmatprep.subr.bf16.mxu0 0
          %1152 = vmatpush1.bf16.msra.mxu0 %v1131
          %1153 = vmatprep.subr.bf16.mxu0 0
          %1154 = vmatpush1.bf16.msra.mxu0 %v1132
          %1155 = vmatprep.subr.bf16.mxu0 0
          %1156 = vmatpush1.bf16.msra.mxu0 %v1133
          %1157 = vmatprep.subr.bf16.mxu0 0
          %1158 = vmatpush1.bf16.msra.mxu0 %v1134
          %1159 = vmatprep.subr.bf16.mxu0 0
          %1160 = vmatpush1.bf16.msra.mxu0 0
          %1161 = vmatprep.subr.bf16.mxu0 0
          %1162 = vmatpush1.bf16.msra.mxu0 0
          %1163 = vmatprep.subr.bf16.mxu0 0
          %1164 = vmatpush1.bf16.msra.mxu0 0
          %1165 = vmatprep.subr.bf16.mxu0 0
          %1166 = vmatpush1.bf16.msra.mxu0 0
          %1167 = vmatprep.subr.bf16.mxu0 0
          %1168 = vmatpush1.bf16.msra.mxu0 0
          %1169 = vmatprep.subr.bf16.mxu0 0
          %1170 = vmatpush1.bf16.msra.mxu0 0
          %1171 = vmatprep.subr.bf16.mxu0 0
          %1172 = vmatpush1.bf16.msra.mxu0 0
          %1173 = vmatprep.subr.bf16.mxu0 0
          %1174 = vmatpush1.bf16.msra.mxu0 0
          %1175 = vmatprep.mubr.bf16.mxu0 0
          %1176 = vmatmul.mubr.bf16.gmra.mrb[0].mxu0 %v1071
          %v1177 = vpop.f32.mrb[0].mxu0
          %v1178 = vadd.f32 %v1093, %v1177
          %v1179 = vpop.f32.mrb[0].mxu0
          %v1180 = vpop.f32.mrb[0].mxu0
          %v1181 = vpop.f32.mrb[0].mxu0
          %1182 = vdwg.mxu0
          %1183 = vst [vmem:[#allocation11] sm:$0xff] %v1178
        $region72: #{tpu_custom_call.1} parent=47 // pred_fallthru
          _
        // Predicated region
        $region73: #{tpu_custom_call.1} parent=47 // pred_check
          %p1184 = pneg %p215
        $region74: #{tpu_custom_call.1} parent=47 // pred_check_branch
          %1186 = sbr.rel (%p1184) target = $region76
        $region75: #{tpu_custom_call.1} parent=47 // pred_region
          %s1188 = ssub.s32 128, 128
          %1189 = vsyncadd [#allocation5], %s1188
          %s1190 = smul.addr %s30, 128
          %s1191 = scalar_lea.hbm %s7, %s1190
          %s1193 = sshll.u32 [#allocation11], 4
          %s1194 = int_to_ptr.vmem [resolvable:$true] %s1193
          %1196 = dma.vmem_to_hbm [thread:$0]  %s1194, 128, %s1191, [#allocation5]
        $region76: #{tpu_custom_call.1} parent=47 // pred_fallthru
          _
        // Predicated region
        $region77: #{tpu_custom_call.1} parent=47 // pred_check
          %p1197 = pneg %p215
        $region78: #{tpu_custom_call.1} parent=47 // pred_check_branch
          %1199 = sbr.rel (%p1197) target = $region80
        $region79: #{tpu_custom_call.1} parent=47 // pred_region
          %1200 = dma.done [#allocation5], 128
        $region80: #{tpu_custom_call.1} parent=47 // pred_fallthru
          _
      $region48: #{tpu_custom_call.1} parent=5 // pred_fallthru
        _
      %p1201 = scmp.le.s32.totalorder 2, %s21
      // Predicated region
      $region81: #{tpu_custom_call.1} parent=5 // pred_check
        %p1202 = pneg %p1201
      $region82: #{tpu_custom_call.1} parent=5 // pred_check_branch
        %1204 = sbr.rel (%p1202) target = $region84
      $region83: #{tpu_custom_call.1} parent=5 // pred_region
        %s1205 = ssub.s32 %s21, 2
      $region84: #{tpu_custom_call.1} parent=5 // pred_fallthru
        _
    $region6: #{tpu_custom_call.1} parent=1 // loop_footer
      %s25 = sadd.s32 1, %s21
    $region7: #{tpu_custom_call.1} parent=1 // loop_footer_branch
      %20 = sbr.rel target = $region3
    $region8: #{tpu_custom_call.1} parent=1 // loop_exit
      _
    %1206 = vsyncpa [#allocation4], 1
    %s1207 = scalar_lea.sflag [#allocation4], 1
    %1208 = vsyncpa %s1207, 1
    %1209 = vsyncpa [#allocation7], 1
    %s1210 = scalar_lea.sflag [#allocation7], 1
    %1211 = vsyncpa %s1210, 1
    %1212 = vsyncpa [#allocation10], 1
    %1213 = vsyncpa [#allocation5], 1
    %s1214 = scalar_lea.sflag [#allocation5], 1
    %1215 = vsyncpa %s1214, 1

</llo_original>
